<compile_context>
chip_gen: v7x
topology: tpu7x:2x2x1
jax: 0.10.0
libtpu: 0.0.40
codegen_flags: <defaults>
</compile_context>

<pallas_src>
import jax
import jax.numpy as jnp
from jax.experimental import pallas as pl
from jax.experimental.pallas import tpu as pltpu

LANE = 128
_MIB = 1024 * 1024


# --------------------------------------------------------------------------
# Kernel
# --------------------------------------------------------------------------
def _h_swish_kernel(x_ref, o_ref):
    x = x_ref[...].astype(jnp.float32)
    hs = jnp.clip(x + 3.0, 0.0, 6.0) * (1.0 / 6.0)   # h_sigmoid
    o_ref[...] = (x * hs).astype(o_ref.dtype)


def _h_swish_jnp(x):
    """Tiny-tail / reference path, same f32 arithmetic as the kernel."""
    x32 = x.astype(jnp.float32)
    return (x32 * (jnp.clip(x32 + 3.0, 0.0, 6.0) * (1.0 / 6.0))).astype(x.dtype)


# --------------------------------------------------------------------------
# Tiling helpers
# --------------------------------------------------------------------------
def _round_up(n, m):
    return ((n + m - 1) // m) * m


def _sublane_unit(dtype):
    # Native sublane packing: 8 rows for 32-bit, 16 for 16-bit, 32 for 8-bit.
    bits = jnp.dtype(dtype).itemsize * 8
    return max(8, 256 // bits)


def _vmem_capacity_bytes():
    try:
        info = pltpu.get_tpu_info()
        cap = getattr(info, "vmem_capacity_bytes", None)
        if cap:
            return int(cap)
    except Exception:
        pass
    return 64 * _MIB  # conservative (v7x-sized) fallback


def _budget():
    """(target bytes per block, explicit vmem_limit_bytes), per generation."""
    cap = _vmem_capacity_bytes()
    if cap >= 96 * _MIB:              # v5e / v6e: 128 MiB physical VMEM
        return 8 * _MIB, 64 * _MIB
    if cap >= 48 * _MIB:              # v7x: 64 MiB physical per TensorCore
        return 8 * _MIB, 48 * _MIB    # 4 x 8 MiB live buffers, headroom left
    return 2 * _MIB, min(cap, 16 * _MIB)


def _pick_width(n):
    # Widest lane-dense last dim that divides the aligned length exactly.
    for c in (1024, 512, 256, LANE):
        if n % c == 0:
            return c
    return LANE


# --------------------------------------------------------------------------
# Wrapper
# --------------------------------------------------------------------------
def h_swish(x, *, block_bytes=None, donate_input=False):
    """Applies h_swish elementwise to an NCHW (or any-shape) array."""
    orig_shape = x.shape
    dtype = x.dtype
    n = x.size
    if n == 0:
        return x

    itemsize = jnp.dtype(dtype).itemsize
    x_flat = jnp.ravel(x)

    # Lane-aligned prefix goes through Pallas; the (<128 elem) tail through
    # plain jnp. Avoids the whole-tensor pad + slice copies of a pad path.
    main_len = (n // LANE) * LANE
    tail_len = n - main_len
    if main_len == 0:
        return _h_swish_jnp(x_flat).reshape(orig_shape)

    x_main = x_flat[:main_len] if tail_len else x_flat
    cols = _pick_width(main_len)
    rows = main_len // cols
    x2d = x_main.reshape(rows, cols)

    tgt_block_bytes, vmem_limit = _budget()
    if block_bytes is not None:
        tgt_block_bytes = block_bytes

    unit = _sublane_unit(dtype)
    tr = tgt_block_bytes // (cols * itemsize)
    tr = max(unit, (tr // unit) * unit)
    if tr >= rows:
        tr = rows                       # single full-extent block (always legal)
    nb = pl.cdiv(rows, tr)

    # For big tensors, make sure the "parallel" axis has enough blocks (and an
    # even count) so v7x's two TensorCores both get work with no 1-block tail.
    total_bytes = rows * cols * itemsize
    if total_bytes >= 32 * _MIB and nb < 8:
        tr = max(unit, (pl.cdiv(rows, 8) // unit) * unit)
        nb = pl.cdiv(rows, tr)
    elif total_bytes >= 4 * _MIB and nb < 2:
        tr = max(unit, (pl.cdiv(rows, 2) // unit) * unit)
        nb = pl.cdiv(rows, tr)
    if nb > 1 and nb % 2 == 1:
        tr_alt = max(unit, _round_up(pl.cdiv(rows, nb + 1), unit))
        if pl.cdiv(rows, tr_alt) % 2 == 0:
            tr = tr_alt
            nb = pl.cdiv(rows, tr)

    cost = pl.CostEstimate(
        flops=4 * main_len,
        transcendentals=0,
        bytes_accessed=2 * main_len * itemsize,
    )

    out2d = pl.pallas_call(
        _h_swish_kernel,
        out_shape=jax.ShapeDtypeStruct((rows, cols), dtype),
        grid_spec=pltpu.PrefetchScalarGridSpec(
            num_scalar_prefetch=0,
            grid=(nb,),
            in_specs=[pl.BlockSpec((tr, cols), lambda i: (i, 0))],
            out_specs=pl.BlockSpec((tr, cols), lambda i: (i, 0)),
        ),
        compiler_params=pltpu.CompilerParams(
            dimension_semantics=("parallel",),
            vmem_limit_bytes=vmem_limit,
        ),
        cost_estimate=cost,
        # Only alias when the caller actually donates the activation buffer;
        # aliasing a live input would force XLA to insert a defensive copy.
        input_output_aliases=({0: 0} if donate_input else {}),
    )(x2d)

    out_flat = out2d.reshape(-1)
    if tail_len:
        out_flat = jnp.concatenate([out_flat, _h_swish_jnp(x_flat[main_len:])])
    return out_flat.reshape(orig_shape)


# --------------------------------------------------------------------------
# Reference + self-test
# --------------------------------------------------------------------------
def h_swish_ref(x):
    x32 = x.astype(jnp.float32)
    return (x32 * (jnp.clip(x32 + 3.0, 0.0, 6.0) / 6.0)).astype(x.dtype)


if __name__ == "__main__":
    key = jax.random.PRNGKey(0)

    # NCHW activation, small shape consistent with MobileNetV3 usage.
    x = jax.random.normal(key, (2, 4, 16, 16), dtype=jnp.float32) * 4.0
    y = jax.block_until_ready(h_swish(x))
    assert y.shape == x.shape and y.dtype == x.dtype
    assert jnp.allclose(y, h_swish_ref(x), atol=1e-6, rtol=1e-6)

    # Ragged / non-lane-aligned element count exercises the prefix+tail path.
    k2 = jax.random.PRNGKey(0)
    x2 = jax.random.normal(k2, (3, 5, 7, 9), dtype=jnp.float32) * 4.0
    y2 = jax.block_until_ready(h_swish(x2))
    assert y2.shape == x2.shape and y2.dtype == x2.dtype
    assert jnp.allclose(y2, h_swish_ref(x2), atol=1e-6, rtol=1e-6)

    # bf16 path: math done in f32 in-kernel, cast once at the store.
    k3 = jax.random.PRNGKey(0)
    x3 = (jax.random.normal(k3, (2, 16, 24, 24), dtype=jnp.float32) * 4.0
          ).astype(jnp.bfloat16)
    y3 = jax.block_until_ready(h_swish(x3))
    assert y3.shape == x3.shape and y3.dtype == x3.dtype
    assert jnp.allclose(y3.astype(jnp.float32),
                        h_swish_ref(x3).astype(jnp.float32),
                        atol=2e-2, rtol=2e-2)

    print("KERNEL_OK")
</pallas_src>

<mosaic_0001>
module attributes {stable_mosaic.version = 11 : i64} {
  func.func @_h_swish_kernel(%arg0: i32, %arg1: memref<2x1024xf32, #tpu.memory_space<vmem>>, %arg2: memref<2x1024xf32, #tpu.memory_space<vmem>>) attributes {dimension_semantics = [#tpu.dimension_semantics<parallel>], iteration_bounds = array<i64: 1>, scalar_prefetch = 0 : i64, scratch_operands = 0 : i64, tpu.core_type = #tpu.core_type<tc>, window_params = [{transform_indices = @transform_0, window_bounds = array<i64: 2, 1024>}, {transform_indices = @transform_1, window_bounds = array<i64: 2, 1024>}]} {
    %c0 = arith.constant 0 : index
    %c0_0 = arith.constant 0 : index
    %0 = vector.load %arg1[%c0, %c0_0] : memref<2x1024xf32, #tpu.memory_space<vmem>>, vector<2x1024xf32>
    %cst = arith.constant 3.000000e+00 : f32
    %1 = vector.broadcast %cst : f32 to vector<2x1024xf32>
    %2 = arith.addf %0, %1 : vector<2x1024xf32>
    %cst_1 = arith.constant 0.000000e+00 : f32
    %cst_2 = arith.constant 6.000000e+00 : f32
    %3 = vector.broadcast %cst_1 : f32 to vector<2x1024xf32>
    %4 = arith.maximumf %3, %2 : vector<2x1024xf32>
    %5 = vector.broadcast %cst_2 : f32 to vector<2x1024xf32>
    %6 = arith.minimumf %5, %4 : vector<2x1024xf32>
    %cst_3 = arith.constant 0.166666672 : f32
    %7 = vector.broadcast %cst_3 : f32 to vector<2x1024xf32>
    %8 = arith.mulf %6, %7 : vector<2x1024xf32>
    %9 = arith.mulf %0, %8 : vector<2x1024xf32>
    %c0_4 = arith.constant 0 : index
    %c0_5 = arith.constant 0 : index
    %10 = vector.load %arg2[%c0_4, %c0_5] : memref<2x1024xf32, #tpu.memory_space<vmem>>, vector<2x1024xf32>
    tpu.vector_store %arg2[%c0_4, %c0_5], %9 {strides = array<i32>} : memref<2x1024xf32, #tpu.memory_space<vmem>>, vector<2x1024xf32>,
    return
  }
  func.func @transform_0(%arg0: i32) -> (i32, i32) {
    %c0_i32 = arith.constant 0 : i32
    %c0_i32_0 = arith.constant 0 : i32
    return %arg0, %c0_i32 : i32, i32
  }
  func.func @transform_1(%arg0: i32) -> (i32, i32) {
    %c0_i32 = arith.constant 0 : i32
    %c0_i32_0 = arith.constant 0 : i32
    return %arg0, %c0_i32 : i32, i32
  }
}

</mosaic_0001>

<llo_original>
// kernel: tpu_custom_call.1
$region0: #{tpu_custom_call.1}
  #allocation0 [shape = 'u32[]', space=smem, size = 0x4, offset = 0x4, fixed_abs, tag = 'smem constant byte address 0x4 - core index']
  #allocation1 [shape = 'u32[144,128]{1,0:T(1,128)}', space=vmem, size = 0x12000, scoped, tag = 'internal scratch']
  %s0 = inlined_call_operand.hbm [shape: f32[2,1024], index: 0, kind: input, shape index: {}]
  %s1 = inlined_call_operand.hbm [shape: f32[2,1024], index: 1, kind: output, shape index: {}]
  %s2 = sld [smem:[#allocation0]]
  $region18: #{tpu_custom_call.1} parent=0
    _
  %s4 = ssub.s32 1, %s2
  %s5 = scalar_select 0, %s4, %s2
  $region1: #{tpu_custom_call.1} parent=0
    #allocation2 [shape = 'u8[8192]{0}', space=vmem, size = 0x2000, scoped, tag = 'input window, operand 0, single buffered']
    #allocation3 [shape = 's32[1]{0}', space=sflag, size = 0x4, scoped, tag = 'scoped memory for tpu_custom_call.1']
    #allocation4 [shape = 's32[1]{0}', space=sflag, size = 0x4, scoped, tag = 'scoped memory for tpu_custom_call.1']
    #allocation5 [shape = 'u8[8192]{0}', space=vmem, size = 0x2000, scoped, tag = 'output window, operand 0, single buffered']
    %6 = vsyncpa [#allocation3], 0
    %7 = vsyncpa [#allocation4], 0
    // Predicated region
    $region2: #{tpu_custom_call.1} parent=1 // pred_check
      _
    $region3: #{tpu_custom_call.1} parent=1 // pred_check_branch
      %9 = sbr.rel (0) target = $region5
    $region4: #{tpu_custom_call.1} parent=1 // pred_region
      %s11 = ssub.s32 256, 256
      %12 = vsyncadd [#allocation3], %s11
      %s14 = sshll.u32 [#allocation2], 4
      %s15 = int_to_ptr.vmem [resolvable:$true] %s14
      %17 = dma.hbm_to_vmem [thread:$0]  %s0, 256, %s15, [#allocation3]
    $region5: #{tpu_custom_call.1} parent=1 // pred_fallthru
      _
    // Predicated region
    $region6: #{tpu_custom_call.1} parent=1 // pred_check
      _
    $region7: #{tpu_custom_call.1} parent=1 // pred_check_branch
      %19 = sbr.rel (0) target = $region9
    $region8: #{tpu_custom_call.1} parent=1 // pred_region
      %20 = dma.done [#allocation3], 256
    $region9: #{tpu_custom_call.1} parent=1 // pred_fallthru
      _
    %v21 = vld [vmem:[#allocation2] sm:$0xff]
    %v22 = vld [vmem:[#allocation2 + $0x8] sm:$0xff]
    %v23 = vadd.f32 %v21, 3.0
    %v24 = vadd.f32 %v22, 3.0
    %v25 = vmax.f32 %v23, 0.0
    %v26 = vmax.f32 %v24, 0.0
    %v27 = vmin.f32 %v25, 6.0
    %v28 = vmin.f32 %v26, 6.0
    %v29 = vmul.f32 %v27, 0.16666667
    %v30 = vmul.f32 %v28, 0.16666667
    %v31 = vmul.f32 %v21, %v29
    %v32 = vmul.f32 %v22, %v30
    %33 = vst [vmem:[#allocation5] sm:$0xff] %v31
    %34 = vst [vmem:[#allocation5 + $0x8] sm:$0xff] %v32
    // Predicated region
    $region10: #{tpu_custom_call.1} parent=1 // pred_check
      _
    $region11: #{tpu_custom_call.1} parent=1 // pred_check_branch
      %36 = sbr.rel (0) target = $region13
    $region12: #{tpu_custom_call.1} parent=1 // pred_region
      %s38 = ssub.s32 256, 256
      %39 = vsyncadd [#allocation4], %s38
      %s41 = sshll.u32 [#allocation5], 4
      %s42 = int_to_ptr.vmem [resolvable:$true] %s41
      %44 = dma.vmem_to_hbm [thread:$0]  %s42, 256, %s1, [#allocation4]
    $region13: #{tpu_custom_call.1} parent=1 // pred_fallthru
      _
    // Predicated region
    $region14: #{tpu_custom_call.1} parent=1 // pred_check
      _
    $region15: #{tpu_custom_call.1} parent=1 // pred_check_branch
      %46 = sbr.rel (0) target = $region17
    $region16: #{tpu_custom_call.1} parent=1 // pred_region
      %47 = dma.done [#allocation4], 256
    $region17: #{tpu_custom_call.1} parent=1 // pred_fallthru
      _
    %48 = vsyncpa [#allocation3], 1
    %49 = vsyncpa [#allocation4], 1

</llo_original>
